<compile_context>
chip_gen: v7x
topology: tpu7x:2x2x1
jax: 0.10.0
libtpu: 0.0.40
codegen_flags: <defaults>
</compile_context>

<pallas_src>
import jax
import jax.numpy as jnp
from jax.experimental import pallas as pl
from jax.experimental.pallas import tpu as pltpu


def _residual_kernel(x_ref, ns_ref, c_ref, o_ref):
    # x_ref : (tm, D) row tile            ns_ref: (D, P) resident projection
    # c_ref : (1, P) = u * colsum(ns)     o_ref : (tm, 1) per-row norms
    y = jnp.dot(x_ref[...], ns_ref[...], preferred_element_type=jnp.float32)
    y = y - c_ref[...]                      # (x - u) @ ns == x @ ns - u * colsum(ns)
    p = ns_ref.shape[1]
    ones = jnp.ones((p, 1), jnp.float32)    # MXU ones-vector row reduction (MXU has slack)
    row_sq = jnp.dot(y * y, ones, preferred_element_type=jnp.float32)   # (tm, 1)
    o_ref[...] = jnp.sqrt(row_sq)


def _round_up(a, b):
    return (a + b - 1) // b * b


def _vmem_estimate(tm, d, p, bpe):
    """Honest per-kernel VMEM estimate in bytes."""
    x_tiles = 2 * tm * d * bpe      # double-buffered x row tile
    ns_res = 2 * d * p * bpe        # Pallas double-buffers even constant-index blocks
    c_res = 2 * p * 4               # folded centering vector
    y_tmp = tm * p * 4              # f32 matmul result
    o_tiles = 2 * tm * 4            # double-buffered output column
    return x_tiles + ns_res + c_res + y_tmp + o_tiles


def _pick_tile(n, d, p, bpe, budget_bytes=28 << 20, tm_cap=4096):
    """Largest multiple-of-128 row tile whose working set fits the budget."""
    tm = tm_cap
    while tm > 128 and _vmem_estimate(tm, d, p, bpe) > budget_bytes:
        tm //= 2
    # Keep >= 2 grid steps when the batch is large enough so the "parallel"
    # batch axis can be sharded across both v7x TensorCores.
    n128 = _round_up(n, 128)
    if n128 >= 256:
        tm = min(tm, _round_up(pl.cdiv(n, 2), 128))
    return max(128, min(tm, n128))


def residual_forward(x, ns, u=0.0, *, tm=None, compute_dtype=jnp.float32):
    """Pallas implementation of Residual.forward: ||(x - u) @ ns||_2 per row."""
    x = jnp.asarray(x)
    ns = jnp.asarray(ns, jnp.float32)
    lead_shape = x.shape[:-1]
    d = x.shape[-1]
    d2, p = ns.shape
    assert d == d2, "feature dim mismatch between x and ns"

    # Fold the scalar centering into a (1, P) constant consumed after the MXU.
    c = (jnp.asarray(u, jnp.float32) * jnp.sum(ns, axis=0)).reshape(1, p)

    x2 = x.reshape(-1, d).astype(compute_dtype)
    ns_c = ns.astype(compute_dtype)
    n = x2.shape[0]

    bpe = jnp.dtype(compute_dtype).itemsize
    if tm is None:
        tm = _pick_tile(n, d, p, bpe)
    vmem_est = _vmem_estimate(tm, d, p, bpe)
    # Explicit scoped-VMEM ceiling (+ headroom), kept below v7x's 64 MiB physical.
    vmem_limit = int(min(56 << 20, max(32 << 20, vmem_est + (8 << 20))))

    grid = (pl.cdiv(n, tm),)  # ragged N: partial last block, OOB stores masked

    out = pl.pallas_call(
        _residual_kernel,
        out_shape=jax.ShapeDtypeStruct((n, 1), jnp.float32),
        grid_spec=pltpu.PrefetchScalarGridSpec(
            num_scalar_prefetch=0,
            grid=grid,
            in_specs=[
                pl.BlockSpec((tm, d), lambda i: (i, 0)),   # x row tile (pipelined)
                pl.BlockSpec((d, p), lambda i: (0, 0)),    # ns resident across steps
                pl.BlockSpec((1, p), lambda i: (0, 0)),    # folded centering vector
            ],
            out_specs=pl.BlockSpec((tm, 1), lambda i: (i, 0)),
        ),
        compiler_params=pltpu.CompilerParams(
            dimension_semantics=("parallel",),
            vmem_limit_bytes=vmem_limit,
        ),
    )(x2, ns_c, c)

    return out.reshape(lead_shape)


if __name__ == "__main__":
    # Small deterministic setup consistent with the module:
    # feat_dim D = 256, dims = 128  ->  ns shape (D, D - dims) = (256, 128)
    D, dims = 256, 128
    P = D - dims

    key = jax.random.PRNGKey(0)
    kx, kn, kx2 = jax.random.split(key, 3)

    # Deterministic stand-in for the minor-eigenvector null-space from fit():
    # an orthonormalized Gaussian block.
    g = jax.random.normal(kn, (D, P), dtype=jnp.float32)
    ns, _ = jnp.linalg.qr(g)
    ns = ns.astype(jnp.float32)

    # Case 1: small batch, u = 0 (module default).
    N1, u1 = 64, 0.0
    x1 = jax.random.normal(kx, (N1, D), dtype=jnp.float32)
    s1 = jax.block_until_ready(residual_forward(x1, ns, u=u1))
    r1 = jnp.linalg.norm((x1 - u1) @ ns, axis=-1)
    assert s1.shape == (N1,)
    assert jnp.allclose(s1, r1, rtol=1e-4, atol=1e-4), "mismatch vs reference (case 1)"

    # Case 2: ragged batch + nonzero centering (exercises partial-block masking
    # and the folded-u path).
    N2, u2 = 100, 0.37
    x2 = jax.random.normal(kx2, (N2, D), dtype=jnp.float32)
    s2 = jax.block_until_ready(residual_forward(x2, ns, u=u2))
    r2 = jnp.linalg.norm((x2 - u2) @ ns, axis=-1)
    assert s2.shape == (N2,)
    assert jnp.allclose(s2, r2, rtol=1e-4, atol=1e-4), "mismatch vs reference (case 2)"

    print("KERNEL_OK")
</pallas_src>

<mosaic_0001>
module attributes {stable_mosaic.version = 11 : i64} {
  func.func @_residual_kernel(%arg0: i32, %arg1: memref<128x256xf32, #tpu.memory_space<vmem>>, %arg2: memref<256x128xf32, #tpu.memory_space<vmem>>, %arg3: memref<1x128xf32, #tpu.memory_space<vmem>>, %arg4: memref<128x1xf32, #tpu.memory_space<vmem>>) attributes {dimension_semantics = [#tpu.dimension_semantics<parallel>], iteration_bounds = array<i64: 1>, scalar_prefetch = 0 : i64, scratch_operands = 0 : i64, tpu.core_type = #tpu.core_type<tc>, window_params = [{transform_indices = @transform_0, window_bounds = array<i64: 128, 256>}, {pipeline_mode = #tpu.pipeline_mode<synchronous>, transform_indices = @transform_1, window_bounds = array<i64: 256, 128>}, {pipeline_mode = #tpu.pipeline_mode<synchronous>, transform_indices = @transform_2, window_bounds = array<i64: 1, 128>}, {transform_indices = @transform_3, window_bounds = array<i64: 128, 1>}]} {
    %c0 = arith.constant 0 : index
    %c0_0 = arith.constant 0 : index
    %0 = vector.load %arg1[%c0, %c0_0] : memref<128x256xf32, #tpu.memory_space<vmem>>, vector<128x256xf32>
    %c0_1 = arith.constant 0 : index
    %c0_2 = arith.constant 0 : index
    %1 = vector.load %arg2[%c0_1, %c0_2] : memref<256x128xf32, #tpu.memory_space<vmem>>, vector<256x128xf32>
    %cst = arith.constant dense<0.000000e+00> : vector<128x128xf32>
    %2 = tpu.matmul %0, %1, %cst {dimension_numbers = #tpu.dot_dimension_numbers<[1], [0], [0], [1], [0, 0, 1, 1], [], []>} : vector<128x256xf32>, vector<256x128xf32>, vector<128x128xf32> -> vector<128x128xf32>
    %c0_3 = arith.constant 0 : index
    %c0_4 = arith.constant 0 : index
    %3 = vector.load %arg3[%c0_3, %c0_4] : memref<1x128xf32, #tpu.memory_space<vmem>>, vector<1x128xf32>
    %4 = vector.broadcast %3 : vector<1x128xf32> to vector<128x128xf32>
    %5 = arith.subf %2, %4 : vector<128x128xf32>
    %cst_5 = arith.constant 1.000000e+00 : f32
    %6 = vector.broadcast %cst_5 : f32 to vector<128x1xf32>
    %7 = arith.mulf %5, %5 : vector<128x128xf32>
    %cst_6 = arith.constant dense<0.000000e+00> : vector<128x1xf32>
    %8 = tpu.matmul %7, %6, %cst_6 {dimension_numbers = #tpu.dot_dimension_numbers<[1], [0], [0], [1], [0, 0, 1, 1], [], []>} : vector<128x128xf32>, vector<128x1xf32>, vector<128x1xf32> -> vector<128x1xf32>
    %9 = math.sqrt %8 : vector<128x1xf32>
    %c0_7 = arith.constant 0 : index
    %c0_8 = arith.constant 0 : index
    %10 = vector.load %arg4[%c0_7, %c0_8] : memref<128x1xf32, #tpu.memory_space<vmem>>, vector<128x1xf32>
    tpu.vector_store %arg4[%c0_7, %c0_8], %9 {strides = array<i32>} : memref<128x1xf32, #tpu.memory_space<vmem>>, vector<128x1xf32>,
    return
  }
  func.func @transform_0(%arg0: i32) -> (i32, i32) {
    %c0_i32 = arith.constant 0 : i32
    %c0_i32_0 = arith.constant 0 : i32
    return %arg0, %c0_i32 : i32, i32
  }
  func.func @transform_1(%arg0: i32) -> (i32, i32) {
    %c0_i32 = arith.constant 0 : i32
    %c0_i32_0 = arith.constant 0 : i32
    %c0_i32_1 = arith.constant 0 : i32
    return %c0_i32, %c0_i32_0 : i32, i32
  }
  func.func @transform_2(%arg0: i32) -> (i32, i32) {
    %c0_i32 = arith.constant 0 : i32
    %c0_i32_0 = arith.constant 0 : i32
    %c0_i32_1 = arith.constant 0 : i32
    return %c0_i32, %c0_i32_0 : i32, i32
  }
  func.func @transform_3(%arg0: i32) -> (i32, i32) {
    %c0_i32 = arith.constant 0 : i32
    %c0_i32_0 = arith.constant 0 : i32
    return %arg0, %c0_i32 : i32, i32
  }
}

</mosaic_0001>

<llo_original>
// kernel: tpu_custom_call.1
$region0: #{tpu_custom_call.1}
  #allocation0 [shape = 'u32[]', space=smem, size = 0x4, offset = 0x4, fixed_abs, tag = 'smem constant byte address 0x4 - core index']
  #allocation1 [shape = 'u32[144,128]{1,0:T(1,128)}', space=vmem, size = 0x12000, scoped, tag = 'internal scratch']
  %s0 = inlined_call_operand.hbm [shape: f32[64,256], index: 0, kind: input, shape index: {}]
  %s1 = inlined_call_operand.hbm [shape: f32[256,128], index: 1, kind: input, shape index: {}]
  %s2 = inlined_call_operand.vmem [shape: f32[1,128], index: 2, kind: input, shape index: {}]
  %s3 = inlined_call_operand.vmem [shape: f32[64,1], index: 3, kind: output, shape index: {}]
  %s4 = sld [smem:[#allocation0]]
  $region64: #{tpu_custom_call.1} parent=0
    _
  %s6 = ssub.s32 1, %s4
  %s7 = scalar_select 0, %s6, %s4
  $region1: #{tpu_custom_call.1} parent=0
    #allocation2 [shape = 'u8[131072]{0}', space=vmem, size = 0x20000, scoped, tag = 'input window, operand 0, single buffered']
    #allocation3 [shape = 's32[1]{0}', space=sflag, size = 0x4, scoped, tag = 'scoped memory for tpu_custom_call.1']
    #allocation4 [shape = 'u8[131072]{0}', space=vmem, size = 0x20000, scoped, tag = 'input window, operand 1, single buffered']
    #allocation5 [shape = 's32[1]{0}', space=sflag, size = 0x4, scoped, tag = 'scoped memory for tpu_custom_call.1']
    #allocation6 [shape = 'u8[65536]{0}', space=vmem, size = 0x10000, scoped, tag = 'output window, operand 0, single buffered']
    %8 = vsyncpa [#allocation3], 0
    %9 = vsyncpa [#allocation5], 0
    // Predicated region
    $region2: #{tpu_custom_call.1} parent=1 // pred_check
      _
    $region3: #{tpu_custom_call.1} parent=1 // pred_check_branch
      %11 = sbr.rel (0) target = $region5
    $region4: #{tpu_custom_call.1} parent=1 // pred_region
      %s13 = ssub.s32 4096, 2048
      %14 = vsyncadd [#allocation3], %s13
      %s15 = sshll.u32 [#allocation2], 4
      %s16 = int_to_ptr.vmem [resolvable:$true] %s15
      %21 = dma.hbm_to_vmem [thread:$0]  %s0, 2048, %s16, [#allocation3], 256, 256, 16
    $region5: #{tpu_custom_call.1} parent=1 // pred_fallthru
      _
    // Predicated region
    $region6: #{tpu_custom_call.1} parent=1 // pred_check
      _
    $region7: #{tpu_custom_call.1} parent=1 // pred_check_branch
      %23 = sbr.rel (0) target = $region9
    $region8: #{tpu_custom_call.1} parent=1 // pred_region
      %s25 = ssub.s32 4096, 4096
      %26 = vsyncadd [#allocation5], %s25
      %s27 = sshll.u32 [#allocation4], 4
      %s28 = int_to_ptr.vmem [resolvable:$true] %s27
      %33 = dma.hbm_to_vmem [thread:$0]  %s1, 4096, %s28, [#allocation5], 128, 128, 8
    $region9: #{tpu_custom_call.1} parent=1 // pred_fallthru
      _
    // Predicated region
    $region10: #{tpu_custom_call.1} parent=1 // pred_check
      _
    $region11: #{tpu_custom_call.1} parent=1 // pred_check_branch
      %35 = sbr.rel (0) target = $region13
    $region12: #{tpu_custom_call.1} parent=1 // pred_region
      _
    $region13: #{tpu_custom_call.1} parent=1 // pred_fallthru
      _
    // Predicated region
    $region14: #{tpu_custom_call.1} parent=1 // pred_check
      _
    $region15: #{tpu_custom_call.1} parent=1 // pred_check_branch
      %37 = sbr.rel (0) target = $region17
    $region16: #{tpu_custom_call.1} parent=1 // pred_region
      %38 = dma.done [#allocation3], 4096
    $region17: #{tpu_custom_call.1} parent=1 // pred_fallthru
      _
    // Predicated region
    $region18: #{tpu_custom_call.1} parent=1 // pred_check
      _
    $region19: #{tpu_custom_call.1} parent=1 // pred_check_branch
      %40 = sbr.rel (0) target = $region21
    $region20: #{tpu_custom_call.1} parent=1 // pred_region
      %41 = dma.done [#allocation5], 4096
    $region21: #{tpu_custom_call.1} parent=1 // pred_fallthru
      _
    %v42 = vld [vmem:[#allocation2] sm:$0xff]
    %v43 = vld [vmem:[#allocation2 + $0x8] sm:$0xff]
    %v44 = vld [vmem:[#allocation2 + $0x10] sm:$0xff]
    %v45 = vld [vmem:[#allocation2 + $0x18] sm:$0xff]
    %v46 = vld [vmem:[#allocation2 + $0x20] sm:$0xff]
    %v47 = vld [vmem:[#allocation2 + $0x28] sm:$0xff]
    %v48 = vld [vmem:[#allocation2 + $0x30] sm:$0xff]
    %v49 = vld [vmem:[#allocation2 + $0x38] sm:$0xff]
    %v50 = vld [vmem:[#allocation2 + $0x40] sm:$0xff]
    %v51 = vld [vmem:[#allocation2 + $0x48] sm:$0xff]
    %v52 = vld [vmem:[#allocation2 + $0x50] sm:$0xff]
    %v53 = vld [vmem:[#allocation2 + $0x58] sm:$0xff]
    %v54 = vld [vmem:[#allocation2 + $0x60] sm:$0xff]
    %v55 = vld [vmem:[#allocation2 + $0x68] sm:$0xff]
    %v56 = vld [vmem:[#allocation2 + $0x70] sm:$0xff]
    %v57 = vld [vmem:[#allocation2 + $0x78] sm:$0xff]
    %v58 = vld [vmem:[#allocation2 + $0x80] sm:$0xff]
    %v59 = vld [vmem:[#allocation2 + $0x88] sm:$0xff]
    %v60 = vld [vmem:[#allocation2 + $0x90] sm:$0xff]
    %v61 = vld [vmem:[#allocation2 + $0x98] sm:$0xff]
    %v62 = vld [vmem:[#allocation2 + $0xa0] sm:$0xff]
    %v63 = vld [vmem:[#allocation2 + $0xa8] sm:$0xff]
    %v64 = vld [vmem:[#allocation2 + $0xb0] sm:$0xff]
    %v65 = vld [vmem:[#allocation2 + $0xb8] sm:$0xff]
    %v66 = vld [vmem:[#allocation2 + $0xc0] sm:$0xff]
    %v67 = vld [vmem:[#allocation2 + $0xc8] sm:$0xff]
    %v68 = vld [vmem:[#allocation2 + $0xd0] sm:$0xff]
    %v69 = vld [vmem:[#allocation2 + $0xd8] sm:$0xff]
    %v70 = vld [vmem:[#allocation2 + $0xe0] sm:$0xff]
    %v71 = vld [vmem:[#allocation2 + $0xe8] sm:$0xff]
    %v72 = vld [vmem:[#allocation2 + $0xf0] sm:$0xff]
    %v73 = vld [vmem:[#allocation2 + $0xf8] sm:$0xff]
    %v74 = vld [vmem:[#allocation4] sm:$0xff]
    %v75 = vld [vmem:[#allocation4 + $0x8] sm:$0xff]
    %v76 = vld [vmem:[#allocation4 + $0x10] sm:$0xff]
    %v77 = vld [vmem:[#allocation4 + $0x18] sm:$0xff]
    %v78 = vld [vmem:[#allocation4 + $0x20] sm:$0xff]
    %v79 = vld [vmem:[#allocation4 + $0x28] sm:$0xff]
    %v80 = vld [vmem:[#allocation4 + $0x30] sm:$0xff]
    %v81 = vld [vmem:[#allocation4 + $0x38] sm:$0xff]
    %v82 = vld [vmem:[#allocation4 + $0x40] sm:$0xff]
    %v83 = vld [vmem:[#allocation4 + $0x48] sm:$0xff]
    %v84 = vld [vmem:[#allocation4 + $0x50] sm:$0xff]
    %v85 = vld [vmem:[#allocation4 + $0x58] sm:$0xff]
    %v86 = vld [vmem:[#allocation4 + $0x60] sm:$0xff]
    %v87 = vld [vmem:[#allocation4 + $0x68] sm:$0xff]
    %v88 = vld [vmem:[#allocation4 + $0x70] sm:$0xff]
    %v89 = vld [vmem:[#allocation4 + $0x78] sm:$0xff]
    %v90 = vld [vmem:[#allocation4 + $0x80] sm:$0xff]
    %v91 = vld [vmem:[#allocation4 + $0x88] sm:$0xff]
    %v92 = vld [vmem:[#allocation4 + $0x90] sm:$0xff]
    %v93 = vld [vmem:[#allocation4 + $0x98] sm:$0xff]
    %v94 = vld [vmem:[#allocation4 + $0xa0] sm:$0xff]
    %v95 = vld [vmem:[#allocation4 + $0xa8] sm:$0xff]
    %v96 = vld [vmem:[#allocation4 + $0xb0] sm:$0xff]
    %v97 = vld [vmem:[#allocation4 + $0xb8] sm:$0xff]
    %v98 = vld [vmem:[#allocation4 + $0xc0] sm:$0xff]
    %v99 = vld [vmem:[#allocation4 + $0xc8] sm:$0xff]
    %v100 = vld [vmem:[#allocation4 + $0xd0] sm:$0xff]
    %v101 = vld [vmem:[#allocation4 + $0xd8] sm:$0xff]
    %v102 = vld [vmem:[#allocation4 + $0xe0] sm:$0xff]
    %v103 = vld [vmem:[#allocation4 + $0xe8] sm:$0xff]
    %v104 = vld [vmem:[#allocation4 + $0xf0] sm:$0xff]
    %v105 = vld [vmem:[#allocation4 + $0xf8] sm:$0xff]
    %106 = vmatprep.subr.mxu0 0.0
    %107 = vmatpush1.msra.mxu0 %v74
    %108 = vmatprep.subr.mxu0 0.0
    %109 = vmatpush1.msra.mxu0 %v75
    %110 = vmatprep.subr.mxu0 0.0
    %111 = vmatpush1.msra.mxu0 %v76
    %112 = vmatprep.subr.mxu0 0.0
    %113 = vmatpush1.msra.mxu0 %v77
    %114 = vmatprep.subr.mxu0 0.0
    %115 = vmatpush1.msra.mxu0 %v78
    %116 = vmatprep.subr.mxu0 0.0
    %117 = vmatpush1.msra.mxu0 %v79
    %118 = vmatprep.subr.mxu0 0.0
    %119 = vmatpush1.msra.mxu0 %v80
    %120 = vmatprep.subr.mxu0 0.0
    %121 = vmatpush1.msra.mxu0 %v81
    %122 = vmatprep.subr.mxu0 0.0
    %123 = vmatpush1.msra.mxu0 %v82
    %124 = vmatprep.subr.mxu0 0.0
    %125 = vmatpush1.msra.mxu0 %v83
    %126 = vmatprep.subr.mxu0 0.0
    %127 = vmatpush1.msra.mxu0 %v84
    %128 = vmatprep.subr.mxu0 0.0
    %129 = vmatpush1.msra.mxu0 %v85
    %130 = vmatprep.subr.mxu0 0.0
    %131 = vmatpush1.msra.mxu0 %v86
    %132 = vmatprep.subr.mxu0 0.0
    %133 = vmatpush1.msra.mxu0 %v87
    %134 = vmatprep.subr.mxu0 0.0
    %135 = vmatpush1.msra.mxu0 %v88
    %136 = vmatprep.subr.mxu0 0.0
    %137 = vmatpush1.msra.mxu0 %v89
    %138 = vmatprep.subr.mxu0 0.0
    %139 = vmatpush1.msra.mxu0 %v90
    %140 = vmatprep.subr.mxu0 0.0
    %141 = vmatpush1.msra.mxu0 %v91
    %142 = vmatprep.subr.mxu0 0.0
    %143 = vmatpush1.msra.mxu0 %v92
    %144 = vmatprep.subr.mxu0 0.0
    %145 = vmatpush1.msra.mxu0 %v93
    %146 = vmatprep.subr.mxu0 0.0
    %147 = vmatpush1.msra.mxu0 %v94
    %148 = vmatprep.subr.mxu0 0.0
    %149 = vmatpush1.msra.mxu0 %v95
    %150 = vmatprep.subr.mxu0 0.0
    %151 = vmatpush1.msra.mxu0 %v96
    %152 = vmatprep.subr.mxu0 0.0
    %153 = vmatpush1.msra.mxu0 %v97
    %154 = vmatprep.subr.mxu0 0.0
    %155 = vmatpush1.msra.mxu0 %v98
    %156 = vmatprep.subr.mxu0 0.0
    %157 = vmatpush1.msra.mxu0 %v99
    %158 = vmatprep.subr.mxu0 0.0
    %159 = vmatpush1.msra.mxu0 %v100
    %160 = vmatprep.subr.mxu0 0.0
    %161 = vmatpush1.msra.mxu0 %v101
    %162 = vmatprep.subr.mxu0 0.0
    %163 = vmatpush1.msra.mxu0 %v102
    %164 = vmatprep.subr.mxu0 0.0
    %165 = vmatpush1.msra.mxu0 %v103
    %166 = vmatprep.subr.mxu0 0.0
    %167 = vmatpush1.msra.mxu0 %v104
    %168 = vmatprep.subr.mxu0 0.0
    %169 = vmatpush1.msra.mxu0 %v105
    %170 = vmatprep.mubr.f32.mxu0 %v43
    %171 = vmatmul.mubr.f32.gmra.mrb[0].mxu0 %v42
    %v172 = vpop.f32.mrb[0].mxu0
    %v173 = vadd.f32 0.0, %v172
    %v174 = vpop.f32.mrb[0].mxu0
    %175 = vmatprep.mubr.f32.mxu0 %v45
    %176 = vmatmul.mubr.f32.gmra.mrb[0].mxu0 %v44
    %v177 = vpop.f32.mrb[0].mxu0
    %v178 = vadd.f32 0.0, %v177
    %v179 = vpop.f32.mrb[0].mxu0
    %180 = vmatprep.mubr.f32.mxu0 %v47
    %181 = vmatmul.mubr.f32.gmra.mrb[0].mxu0 %v46
    %v182 = vpop.f32.mrb[0].mxu0
    %v183 = vadd.f32 0.0, %v182
    %v184 = vpop.f32.mrb[0].mxu0
    %185 = vmatprep.mubr.f32.mxu0 %v49
    %186 = vmatmul.mubr.f32.gmra.mrb[0].mxu0 %v48
    %v187 = vpop.f32.mrb[0].mxu0
    %v188 = vadd.f32 0.0, %v187
    %v189 = vpop.f32.mrb[0].mxu0
    %190 = vmatprep.mubr.f32.mxu0 %v51
    %191 = vmatmul.mubr.f32.gmra.mrb[0].mxu0 %v50
    %v192 = vpop.f32.mrb[0].mxu0
    %v193 = vadd.f32 0.0, %v192
    %v194 = vpop.f32.mrb[0].mxu0
    %195 = vmatprep.mubr.f32.mxu0 %v53
    %196 = vmatmul.mubr.f32.gmra.mrb[0].mxu0 %v52
    %v197 = vpop.f32.mrb[0].mxu0
    %v198 = vadd.f32 0.0, %v197
    %v199 = vpop.f32.mrb[0].mxu0
    %200 = vmatprep.mubr.f32.mxu0 %v55
    %201 = vmatmul.mubr.f32.gmra.mrb[0].mxu0 %v54
    %v202 = vpop.f32.mrb[0].mxu0
    %v203 = vadd.f32 0.0, %v202
    %v204 = vpop.f32.mrb[0].mxu0
    %205 = vmatprep.mubr.f32.mxu0 %v57
    %206 = vmatmul.mubr.f32.gmra.mrb[0].mxu0 %v56
    %v207 = vpop.f32.mrb[0].mxu0
    %v208 = vadd.f32 0.0, %v207
    %v209 = vpop.f32.mrb[0].mxu0
    %210 = vmatprep.mubr.f32.mxu0 %v59
    %211 = vmatmul.mubr.f32.gmra.mrb[0].mxu0 %v58
    %v212 = vpop.f32.mrb[0].mxu0
    %v213 = vadd.f32 0.0, %v212
    %v214 = vpop.f32.mrb[0].mxu0
    %215 = vmatprep.mubr.f32.mxu0 %v61
    %216 = vmatmul.mubr.f32.gmra.mrb[0].mxu0 %v60
    %v217 = vpop.f32.mrb[0].mxu0
    %v218 = vadd.f32 0.0, %v217
    %v219 = vpop.f32.mrb[0].mxu0
    %220 = vmatprep.mubr.f32.mxu0 %v63
    %221 = vmatmul.mubr.f32.gmra.mrb[0].mxu0 %v62
    %v222 = vpop.f32.mrb[0].mxu0
    %v223 = vadd.f32 0.0, %v222
    %v224 = vpop.f32.mrb[0].mxu0
    %225 = vmatprep.mubr.f32.mxu0 %v65
    %226 = vmatmul.mubr.f32.gmra.mrb[0].mxu0 %v64
    %v227 = vpop.f32.mrb[0].mxu0
    %v228 = vadd.f32 0.0, %v227
    %v229 = vpop.f32.mrb[0].mxu0
    %230 = vmatprep.mubr.f32.mxu0 %v67
    %231 = vmatmul.mubr.f32.gmra.mrb[0].mxu0 %v66
    %v232 = vpop.f32.mrb[0].mxu0
    %v233 = vadd.f32 0.0, %v232
    %v234 = vpop.f32.mrb[0].mxu0
    %235 = vmatprep.mubr.f32.mxu0 %v69
    %236 = vmatmul.mubr.f32.gmra.mrb[0].mxu0 %v68
    %v237 = vpop.f32.mrb[0].mxu0
    %v238 = vadd.f32 0.0, %v237
    %v239 = vpop.f32.mrb[0].mxu0
    %240 = vmatprep.mubr.f32.mxu0 %v71
    %241 = vmatmul.mubr.f32.gmra.mrb[0].mxu0 %v70
    %v242 = vpop.f32.mrb[0].mxu0
    %v243 = vadd.f32 0.0, %v242
    %v244 = vpop.f32.mrb[0].mxu0
    %245 = vmatprep.mubr.f32.mxu0 %v73
    %246 = vmatmul.mubr.f32.gmra.mrb[0].mxu0 %v72
    %v247 = vpop.f32.mrb[0].mxu0
    %v248 = vadd.f32 0.0, %v247
    %v249 = vpop.f32.mrb[0].mxu0
    %250 = vdwg.mxu0
    %v251 = vld [vmem:[%s2] sm:$0x1]
    %v253 = vlaneseq
    %v254 = vshrl.u32 %v253, 7
    %v255 = vsub.s32 0, %v254
    %v256 = vrot.slane %v251, %v255
    %v258 = vsub.f32 %v173, %v256
    %v259 = vsub.f32 %v178, %v256
    %v260 = vsub.f32 %v183, %v256
    %v261 = vsub.f32 %v188, %v256
    %v262 = vsub.f32 %v193, %v256
    %v263 = vsub.f32 %v198, %v256
    %v264 = vsub.f32 %v203, %v256
    %v265 = vsub.f32 %v208, %v256
    %v266 = vsub.f32 %v213, %v256
    %v267 = vsub.f32 %v218, %v256
    %v268 = vsub.f32 %v223, %v256
    %v269 = vsub.f32 %v228, %v256
    %v270 = vsub.f32 %v233, %v256
    %v271 = vsub.f32 %v238, %v256
    %v272 = vsub.f32 %v243, %v256
    %v273 = vsub.f32 %v248, %v256
    %v274 = vmul.f32 %v258, %v258
    %v275 = vmul.f32 %v259, %v259
    %v276 = vmul.f32 %v260, %v260
    %v277 = vmul.f32 %v261, %v261
    %v278 = vmul.f32 %v262, %v262
    %v279 = vmul.f32 %v263, %v263
    %v280 = vmul.f32 %v264, %v264
    %v281 = vmul.f32 %v265, %v265
    %v282 = vmul.f32 %v266, %v266
    %v283 = vmul.f32 %v267, %v267
    %v284 = vmul.f32 %v268, %v268
    %v285 = vmul.f32 %v269, %v269
    %v286 = vmul.f32 %v270, %v270
    %v287 = vmul.f32 %v271, %v271
    %v288 = vmul.f32 %v272, %v272
    %v289 = vmul.f32 %v273, %v273
    %290 = vmatprep.subr.mxu0 0.0
    %291 = vmatpush1.msra.mxu0 1.0
    %292 = vmatprep.subr.mxu0 0.0
    %293 = vmatpush1.msra.mxu0 1.0
    %294 = vmatprep.subr.mxu0 0.0
    %295 = vmatpush1.msra.mxu0 1.0
    %296 = vmatprep.subr.mxu0 0.0
    %297 = vmatpush1.msra.mxu0 1.0
    %298 = vmatprep.subr.mxu0 0.0
    %299 = vmatpush1.msra.mxu0 1.0
    %300 = vmatprep.subr.mxu0 0.0
    %301 = vmatpush1.msra.mxu0 1.0
    %302 = vmatprep.subr.mxu0 0.0
    %303 = vmatpush1.msra.mxu0 1.0
    %304 = vmatprep.subr.mxu0 0.0
    %305 = vmatpush1.msra.mxu0 1.0
    %306 = vmatprep.subr.mxu0 0.0
    %307 = vmatpush1.msra.mxu0 1.0
    %308 = vmatprep.subr.mxu0 0.0
    %309 = vmatpush1.msra.mxu0 1.0
    %310 = vmatprep.subr.mxu0 0.0
    %311 = vmatpush1.msra.mxu0 1.0
    %312 = vmatprep.subr.mxu0 0.0
    %313 = vmatpush1.msra.mxu0 1.0
    %314 = vmatprep.subr.mxu0 0.0
    %315 = vmatpush1.msra.mxu0 1.0
    %316 = vmatprep.subr.mxu0 0.0
    %317 = vmatpush1.msra.mxu0 1.0
    %318 = vmatprep.subr.mxu0 0.0
    %319 = vmatpush1.msra.mxu0 1.0
    %320 = vmatprep.subr.mxu0 0.0
    %321 = vmatpush1.msra.mxu0 1.0
    %322 = vmatprep.subr.mxu0 0.0
    %323 = vmatpush1.msra.mxu0 0.0
    %324 = vmatprep.subr.mxu0 0.0
    %325 = vmatpush1.msra.mxu0 0.0
    %326 = vmatprep.subr.mxu0 0.0
    %327 = vmatpush1.msra.mxu0 0.0
    %328 = vmatprep.subr.mxu0 0.0
    %329 = vmatpush1.msra.mxu0 0.0
    %330 = vmatprep.subr.mxu0 0.0
    %331 = vmatpush1.msra.mxu0 0.0
    %332 = vmatprep.subr.mxu0 0.0
    %333 = vmatpush1.msra.mxu0 0.0
    %334 = vmatprep.subr.mxu0 0.0
    %335 = vmatpush1.msra.mxu0 0.0
    %336 = vmatprep.subr.mxu0 0.0
    %337 = vmatpush1.msra.mxu0 0.0
    %338 = vmatprep.subr.mxu0 0.0
    %339 = vmatpush1.msra.mxu0 0.0
    %340 = vmatprep.subr.mxu0 0.0
    %341 = vmatpush1.msra.mxu0 0.0
    %342 = vmatprep.subr.mxu0 0.0
    %343 = vmatpush1.msra.mxu0 0.0
    %344 = vmatprep.subr.mxu0 0.0
    %345 = vmatpush1.msra.mxu0 0.0
    %346 = vmatprep.subr.mxu0 0.0
    %347 = vmatpush1.msra.mxu0 0.0
    %348 = vmatprep.subr.mxu0 0.0
    %349 = vmatpush1.msra.mxu0 0.0
    %350 = vmatprep.subr.mxu0 0.0
    %351 = vmatpush1.msra.mxu0 0.0
    %352 = vmatprep.subr.mxu0 0.0
    %353 = vmatpush1.msra.mxu0 0.0
    %354 = vmatprep.mubr.f32.mxu0 0.0
    %355 = vmatmul.mubr.f32.gmra.mrb[0].mxu0 %v274
    %v356 = vpop.f32.mrb[0].mxu0
    %v357 = vadd.f32 0.0, %v356
    %v358 = vpop.f32.mrb[0].mxu0
    %359 = vmatprep.mubr.f32.mxu0 0.0
    %360 = vmatmul.mubr.f32.gmra.mrb[0].mxu0 %v275
    %v361 = vpop.f32.mrb[0].mxu0
    %v362 = vadd.f32 0.0, %v361
    %v363 = vpop.f32.mrb[0].mxu0
    %364 = vmatprep.mubr.f32.mxu0 0.0
    %365 = vmatmul.mubr.f32.gmra.mrb[0].mxu0 %v276
    %v366 = vpop.f32.mrb[0].mxu0
    %v367 = vadd.f32 0.0, %v366
    %v368 = vpop.f32.mrb[0].mxu0
    %369 = vmatprep.mubr.f32.mxu0 0.0
    %370 = vmatmul.mubr.f32.gmra.mrb[0].mxu0 %v277
    %v371 = vpop.f32.mrb[0].mxu0
    %v372 = vadd.f32 0.0, %v371
    %v373 = vpop.f32.mrb[0].mxu0
    %374 = vmatprep.mubr.f32.mxu0 0.0
    %375 = vmatmul.mubr.f32.gmra.mrb[0].mxu0 %v278
    %v376 = vpop.f32.mrb[0].mxu0
    %v377 = vadd.f32 0.0, %v376
    %v378 = vpop.f32.mrb[0].mxu0
    %379 = vmatprep.mubr.f32.mxu0 0.0
    %380 = vmatmul.mubr.f32.gmra.mrb[0].mxu0 %v279
    %v381 = vpop.f32.mrb[0].mxu0
    %v382 = vadd.f32 0.0, %v381
    %v383 = vpop.f32.mrb[0].mxu0
    %384 = vmatprep.mubr.f32.mxu0 0.0
    %385 = vmatmul.mubr.f32.gmra.mrb[0].mxu0 %v280
    %v386 = vpop.f32.mrb[0].mxu0
    %v387 = vadd.f32 0.0, %v386
    %v388 = vpop.f32.mrb[0].mxu0
    %389 = vmatprep.mubr.f32.mxu0 0.0
    %390 = vmatmul.mubr.f32.gmra.mrb[0].mxu0 %v281
    %v391 = vpop.f32.mrb[0].mxu0
    %v392 = vadd.f32 0.0, %v391
    %v393 = vpop.f32.mrb[0].mxu0
    %394 = vmatprep.mubr.f32.mxu0 0.0
    %395 = vmatmul.mubr.f32.gmra.mrb[0].mxu0 %v282
    %v396 = vpop.f32.mrb[0].mxu0
    %v397 = vadd.f32 0.0, %v396
    %v398 = vpop.f32.mrb[0].mxu0
    %399 = vmatprep.mubr.f32.mxu0 0.0
    %400 = vmatmul.mubr.f32.gmra.mrb[0].mxu0 %v283
    %v401 = vpop.f32.mrb[0].mxu0
    %v402 = vadd.f32 0.0, %v401
    %v403 = vpop.f32.mrb[0].mxu0
    %404 = vmatprep.mubr.f32.mxu0 0.0
    %405 = vmatmul.mubr.f32.gmra.mrb[0].mxu0 %v284
    %v406 = vpop.f32.mrb[0].mxu0
    %v407 = vadd.f32 0.0, %v406
    %v408 = vpop.f32.mrb[0].mxu0
    %409 = vmatprep.mubr.f32.mxu0 0.0
    %410 = vmatmul.mubr.f32.gmra.mrb[0].mxu0 %v285
    %v411 = vpop.f32.mrb[0].mxu0
    %v412 = vadd.f32 0.0, %v411
    %v413 = vpop.f32.mrb[0].mxu0
    %414 = vmatprep.mubr.f32.mxu0 0.0
    %415 = vmatmul.mubr.f32.gmra.mrb[0].mxu0 %v286
    %v416 = vpop.f32.mrb[0].mxu0
    %v417 = vadd.f32 0.0, %v416
    %v418 = vpop.f32.mrb[0].mxu0
    %419 = vmatprep.mubr.f32.mxu0 0.0
    %420 = vmatmul.mubr.f32.gmra.mrb[0].mxu0 %v287
    %v421 = vpop.f32.mrb[0].mxu0
    %v422 = vadd.f32 0.0, %v421
    %v423 = vpop.f32.mrb[0].mxu0
    %424 = vmatprep.mubr.f32.mxu0 0.0
    %425 = vmatmul.mubr.f32.gmra.mrb[0].mxu0 %v288
    %v426 = vpop.f32.mrb[0].mxu0
    %v427 = vadd.f32 0.0, %v426
    %v428 = vpop.f32.mrb[0].mxu0
    %429 = vmatprep.mubr.f32.mxu0 0.0
    %430 = vmatmul.mubr.f32.gmra.mrb[0].mxu0 %v289
    %v431 = vpop.f32.mrb[0].mxu0
    %v432 = vadd.f32 0.0, %v431
    %v433 = vpop.f32.mrb[0].mxu0
    %434 = vdwg.mxu0
    %v435 = vrsqrt.pop %v357
    %v436 = vmul.f32 %v357, %v435
    %vm437 = vcmp.eq.f32.partialorder %v357, inf
    %v438 = vsel %vm437, %v357, %v436
    %vm439 = vcmp.eq.f32.partialorder %v357, 0.0
    %v440 = vand.u32 %v357, 2147483648
    %v441 = vsel %vm439, %v440, %v438
    %v442 = vrsqrt.pop %v362
    %v443 = vmul.f32 %v362, %v442
    %vm444 = vcmp.eq.f32.partialorder %v362, inf
    %v445 = vsel %vm444, %v362, %v443
    %vm446 = vcmp.eq.f32.partialorder %v362, 0.0
    %v447 = vand.u32 %v362, 2147483648
    %v448 = vsel %vm446, %v447, %v445
    %v449 = vrsqrt.pop %v367
    %v450 = vmul.f32 %v367, %v449
    %vm451 = vcmp.eq.f32.partialorder %v367, inf
    %v452 = vsel %vm451, %v367, %v450
    %vm453 = vcmp.eq.f32.partialorder %v367, 0.0
    %v454 = vand.u32 %v367, 2147483648
    %v455 = vsel %vm453, %v454, %v452
    %v456 = vrsqrt.pop %v372
    %v457 = vmul.f32 %v372, %v456
    %vm458 = vcmp.eq.f32.partialorder %v372, inf
    %v459 = vsel %vm458, %v372, %v457
    %vm460 = vcmp.eq.f32.partialorder %v372, 0.0
    %v461 = vand.u32 %v372, 2147483648
    %v462 = vsel %vm460, %v461, %v459
    %v463 = vrsqrt.pop %v377
    %v464 = vmul.f32 %v377, %v463
    %vm465 = vcmp.eq.f32.partialorder %v377, inf
    %v466 = vsel %vm465, %v377, %v464
    %vm467 = vcmp.eq.f32.partialorder %v377, 0.0
    %v468 = vand.u32 %v377, 2147483648
    %v469 = vsel %vm467, %v468, %v466
    %v470 = vrsqrt.pop %v382
    %v471 = vmul.f32 %v382, %v470
    %vm472 = vcmp.eq.f32.partialorder %v382, inf
    %v473 = vsel %vm472, %v382, %v471
    %vm474 = vcmp.eq.f32.partialorder %v382, 0.0
    %v475 = vand.u32 %v382, 2147483648
    %v476 = vsel %vm474, %v475, %v473
    %v477 = vrsqrt.pop %v387
    %v478 = vmul.f32 %v387, %v477
    %vm479 = vcmp.eq.f32.partialorder %v387, inf
    %v480 = vsel %vm479, %v387, %v478
    %vm481 = vcmp.eq.f32.partialorder %v387, 0.0
    %v482 = vand.u32 %v387, 2147483648
    %v483 = vsel %vm481, %v482, %v480
    %v484 = vrsqrt.pop %v392
    %v485 = vmul.f32 %v392, %v484
    %vm486 = vcmp.eq.f32.partialorder %v392, inf
    %v487 = vsel %vm486, %v392, %v485
    %vm488 = vcmp.eq.f32.partialorder %v392, 0.0
    %v489 = vand.u32 %v392, 2147483648
    %v490 = vsel %vm488, %v489, %v487
    %v491 = vrsqrt.pop %v397
    %v492 = vmul.f32 %v397, %v491
    %vm493 = vcmp.eq.f32.partialorder %v397, inf
    %v494 = vsel %vm493, %v397, %v492
    %vm495 = vcmp.eq.f32.partialorder %v397, 0.0
    %v496 = vand.u32 %v397, 2147483648
    %v497 = vsel %vm495, %v496, %v494
    %v498 = vrsqrt.pop %v402
    %v499 = vmul.f32 %v402, %v498
    %vm500 = vcmp.eq.f32.partialorder %v402, inf
    %v501 = vsel %vm500, %v402, %v499
    %vm502 = vcmp.eq.f32.partialorder %v402, 0.0
    %v503 = vand.u32 %v402, 2147483648
    %v504 = vsel %vm502, %v503, %v501
    %v505 = vrsqrt.pop %v407
    %v506 = vmul.f32 %v407, %v505
    %vm507 = vcmp.eq.f32.partialorder %v407, inf
    %v508 = vsel %vm507, %v407, %v506
    %vm509 = vcmp.eq.f32.partialorder %v407, 0.0
    %v510 = vand.u32 %v407, 2147483648
    %v511 = vsel %vm509, %v510, %v508
    %v512 = vrsqrt.pop %v412
    %v513 = vmul.f32 %v412, %v512
    %vm514 = vcmp.eq.f32.partialorder %v412, inf
    %v515 = vsel %vm514, %v412, %v513
    %vm516 = vcmp.eq.f32.partialorder %v412, 0.0
    %v517 = vand.u32 %v412, 2147483648
    %v518 = vsel %vm516, %v517, %v515
    %v519 = vrsqrt.pop %v417
    %v520 = vmul.f32 %v417, %v519
    %vm521 = vcmp.eq.f32.partialorder %v417, inf
    %v522 = vsel %vm521, %v417, %v520
    %vm523 = vcmp.eq.f32.partialorder %v417, 0.0
    %v524 = vand.u32 %v417, 2147483648
    %v525 = vsel %vm523, %v524, %v522
    %v526 = vrsqrt.pop %v422
    %v527 = vmul.f32 %v422, %v526
    %vm528 = vcmp.eq.f32.partialorder %v422, inf
    %v529 = vsel %vm528, %v422, %v527
    %vm530 = vcmp.eq.f32.partialorder %v422, 0.0
    %v531 = vand.u32 %v422, 2147483648
    %v532 = vsel %vm530, %v531, %v529
    %v533 = vrsqrt.pop %v427
    %v534 = vmul.f32 %v427, %v533
    %vm535 = vcmp.eq.f32.partialorder %v427, inf
    %v536 = vsel %vm535, %v427, %v534
    %vm537 = vcmp.eq.f32.partialorder %v427, 0.0
    %v538 = vand.u32 %v427, 2147483648
    %v539 = vsel %vm537, %v538, %v536
    %v540 = vrsqrt.pop %v432
    %v541 = vmul.f32 %v432, %v540
    %vm542 = vcmp.eq.f32.partialorder %v432, inf
    %v543 = vsel %vm542, %v432, %v541
    %vm544 = vcmp.eq.f32.partialorder %v432, 0.0
    %v545 = vand.u32 %v432, 2147483648
    %v546 = vsel %vm544, %v545, %v543
    %vm547 = vcmask 7168
    %548 = vst.msk [vmem:[#allocation6] sm:$0xff] %vm547, %v441
    %549 = vst.msk [vmem:[#allocation6 + $0x8] sm:$0xff] %vm547, %v448
    %550 = vst.msk [vmem:[#allocation6 + $0x10] sm:$0xff] %vm547, %v455
    %551 = vst.msk [vmem:[#allocation6 + $0x18] sm:$0xff] %vm547, %v462
    %552 = vst.msk [vmem:[#allocation6 + $0x20] sm:$0xff] %vm547, %v469
    %553 = vst.msk [vmem:[#allocation6 + $0x28] sm:$0xff] %vm547, %v476
    %554 = vst.msk [vmem:[#allocation6 + $0x30] sm:$0xff] %vm547, %v483
    %555 = vst.msk [vmem:[#allocation6 + $0x38] sm:$0xff] %vm547, %v490
    %556 = vst.msk [vmem:[#allocation6 + $0x40] sm:$0xff] %vm547, %v497
    %557 = vst.msk [vmem:[#allocation6 + $0x48] sm:$0xff] %vm547, %v504
    %558 = vst.msk [vmem:[#allocation6 + $0x50] sm:$0xff] %vm547, %v511
    %559 = vst.msk [vmem:[#allocation6 + $0x58] sm:$0xff] %vm547, %v518
    %560 = vst.msk [vmem:[#allocation6 + $0x60] sm:$0xff] %vm547, %v525
    %561 = vst.msk [vmem:[#allocation6 + $0x68] sm:$0xff] %vm547, %v532
    %562 = vst.msk [vmem:[#allocation6 + $0x70] sm:$0xff] %vm547, %v539
    %563 = vst.msk [vmem:[#allocation6 + $0x78] sm:$0xff] %vm547, %v546
    // Predicated region
    $region22: #{tpu_custom_call.1} parent=1 // pred_check
      _
    $region23: #{tpu_custom_call.1} parent=1 // pred_check_branch
      %565 = sbr.rel (0) target = $region25
    $region24: #{tpu_custom_call.1} parent=1 // pred_region
      // Predicated region
      $region26: #{tpu_custom_call.1} parent=24 // pred_check
        _
      $region27: #{tpu_custom_call.1} parent=24 // pred_check_branch
        %567 = sbr.rel (0) target = $region29
      $region28: #{tpu_custom_call.1} parent=24 // pred_region
        // Predicated region
        $region30: #{tpu_custom_call.1} parent=28 // pred_check
          _
        $region31: #{tpu_custom_call.1} parent=28 // pred_check_branch
          %569 = sbr.rel (0) target = $region33
        $region32: #{tpu_custom_call.1} parent=28 // pred_region
          // Predicated region
          $region45: #{tpu_custom_call.1} parent=32 // pred_check
            _
          $region46: #{tpu_custom_call.1} parent=32 // pred_check_branch
            %598 = sbr.rel (0) target = $region48
          $region47: #{tpu_custom_call.1} parent=32 // pred_region
            loop: start=0, step=1, limit=1
            $region49: #{tpu_custom_call.1} parent=47 // loop_pre_header
              _
            $region50: #{tpu_custom_call.1} parent=47 // loop_header
              %s600 = sphi 0, %s604
              %p601 = scmp.ge.s32.totalorder %s600, 1
              %s605 = sphi [#allocation6], [#allocation6]
              %s606 = sphi %s3, %s3
            $region51: #{tpu_custom_call.1} parent=47 // loop_header_branch
              %603 = sbr.rel (%p601) target = $region55
            $region52: #{tpu_custom_call.1} parent=47 // loop_body
              %v607 = vld [vmem:[%s605] sm:$0xff]
              %608 = vst [vmem:[%s606] sm:$0xff] %v607
              %v609 = vld [vmem:[%s605 + $0x8] sm:$0xff]
              %610 = vst [vmem:[%s606 + $0x8] sm:$0xff] %v609
              %v611 = vld [vmem:[%s605 + $0x10] sm:$0xff]
              %612 = vst [vmem:[%s606 + $0x10] sm:$0xff] %v611
              %v613 = vld [vmem:[%s605 + $0x18] sm:$0xff]
              %614 = vst [vmem:[%s606 + $0x18] sm:$0xff] %v613
              %v615 = vld [vmem:[%s605 + $0x20] sm:$0xff]
              %616 = vst [vmem:[%s606 + $0x20] sm:$0xff] %v615
              %v617 = vld [vmem:[%s605 + $0x28] sm:$0xff]
              %618 = vst [vmem:[%s606 + $0x28] sm:$0xff] %v617
              %v619 = vld [vmem:[%s605 + $0x30] sm:$0xff]
              %620 = vst [vmem:[%s606 + $0x30] sm:$0xff] %v619
              %v621 = vld [vmem:[%s605 + $0x38] sm:$0xff]
              %622 = vst [vmem:[%s606 + $0x38] sm:$0xff] %v621
            $region53: #{tpu_custom_call.1} parent=47 // loop_footer
              %s604 = sadd.s32 1, %s600
            $region54: #{tpu_custom_call.1} parent=47 // loop_footer_branch
              %599 = sbr.rel target = $region50
            $region55: #{tpu_custom_call.1} parent=47 // loop_exit
              _
          $region48: #{tpu_custom_call.1} parent=32 // pred_fallthru
            _
          // Predicated region
          $region56: #{tpu_custom_call.1} parent=32 // pred_check
            _
          $region57: #{tpu_custom_call.1} parent=32 // pred_check_branch
            %624 = sbr.rel target = $region59
          $region58: #{tpu_custom_call.1} parent=32 // pred_region
            _
          $region59: #{tpu_custom_call.1} parent=32 // pred_fallthru
            _
        $region33: #{tpu_custom_call.1} parent=28 // pred_fallthru
          _
        // Predicated region
        $region34: #{tpu_custom_call.1} parent=28 // pred_check
          _
        $region35: #{tpu_custom_call.1} parent=28 // pred_check_branch
          %571 = sbr.rel target = $region37
        $region36: #{tpu_custom_call.1} parent=28 // pred_region
          loop: start=0, step=1, limit=1
          $region38: #{tpu_custom_call.1} parent=36 // loop_pre_header
            _
          $region39: #{tpu_custom_call.1} parent=36 // loop_header
            %s574 = sphi 0, %s578
            %p575 = scmp.ge.s32.totalorder %s574, 1
            %s579 = sphi [#allocation6], [#allocation6]
            %s580 = sphi %s3, %s3
          $region40: #{tpu_custom_call.1} parent=36 // loop_header_branch
            %577 = sbr.rel (%p575) target = $region44
          $region41: #{tpu_custom_call.1} parent=36 // loop_body
            %v581 = vld [vmem:[%s579] sm:$0xff]
            %582 = vst [vmem:[%s580] sm:$0xff] %v581
            %v583 = vld [vmem:[%s579 + $0x8] sm:$0xff]
            %584 = vst [vmem:[%s580 + $0x8] sm:$0xff] %v583
            %v585 = vld [vmem:[%s579 + $0x10] sm:$0xff]
            %586 = vst [vmem:[%s580 + $0x10] sm:$0xff] %v585
            %v587 = vld [vmem:[%s579 + $0x18] sm:$0xff]
            %588 = vst [vmem:[%s580 + $0x18] sm:$0xff] %v587
            %v589 = vld [vmem:[%s579 + $0x20] sm:$0xff]
            %590 = vst [vmem:[%s580 + $0x20] sm:$0xff] %v589
            %v591 = vld [vmem:[%s579 + $0x28] sm:$0xff]
            %592 = vst [vmem:[%s580 + $0x28] sm:$0xff] %v591
            %v593 = vld [vmem:[%s579 + $0x30] sm:$0xff]
            %594 = vst [vmem:[%s580 + $0x30] sm:$0xff] %v593
            %v595 = vld [vmem:[%s579 + $0x38] sm:$0xff]
            %596 = vst [vmem:[%s580 + $0x38] sm:$0xff] %v595
          $region42: #{tpu_custom_call.1} parent=36 // loop_footer
            %s578 = sadd.s32 1, %s574
          $region43: #{tpu_custom_call.1} parent=36 // loop_footer_branch
            %573 = sbr.rel target = $region39
          $region44: #{tpu_custom_call.1} parent=36 // loop_exit
            _
        $region37: #{tpu_custom_call.1} parent=28 // pred_fallthru
          _
      $region29: #{tpu_custom_call.1} parent=24 // pred_fallthru
        _
      %625 = vnop
    $region25: #{tpu_custom_call.1} parent=1 // pred_fallthru
      _
    // Predicated region
    $region60: #{tpu_custom_call.1} parent=1 // pred_check
      _
    $region61: #{tpu_custom_call.1} parent=1 // pred_check_branch
      %627 = sbr.rel (0) target = $region63
    $region62: #{tpu_custom_call.1} parent=1 // pred_region
      _
    $region63: #{tpu_custom_call.1} parent=1 // pred_fallthru
      _
    %628 = vsyncpa [#allocation3], 1
    %629 = vsyncpa [#allocation5], 1

</llo_original>
